<compile_context>
chip_gen: v7x
topology: tpu7x:2x2x1
jax: 0.10.0
libtpu: 0.0.40
codegen_flags: <defaults>
</compile_context>

<pallas_src>
import jax
import jax.numpy as jnp
from jax.experimental import pallas as pl
from jax.experimental.pallas import tpu as pltpu

BN_EPS = 1e-5


def _cdiv(a, b):
    return -(-a // b)


def _round_up(a, b):
    return _cdiv(a, b) * b


def _make_kernel(c_out, m_off, n_sub, tl_sub, tl_outer, win):
    """Builds the kernel for fixed (static) tiling parameters."""

    def kernel(uph_hbm, w_ref, bias_ref, out_ref, buf, sem):
        # uph_hbm : (B, 2*C_in_p, Lu) bf16 HBM ref   (phase-split, padded input)
        # w_ref   : (m_off, c_out, 2*C_in_p) bf16    (BN-folded, phase-paired taps)
        # bias_ref: (c_out, 1) f32                   (BN-folded shift)
        # out_ref : (1, c_out, tl_outer) f32         (NCL output tile, lane-dense)
        # buf     : (2, 2*C_in_p, win) bf16 VMEM     (double-buffered halo window)
        # sem     : DMA semaphores, shape (2,)
        b = pl.program_id(0)
        j = pl.program_id(1)
        nj = pl.num_programs(1)
        slot = j % 2

        def start_fetch(jj, sl):
            pltpu.make_async_copy(
                uph_hbm.at[b, :, pl.ds(jj * tl_outer, win)],
                buf.at[sl],
                sem.at[sl],
            ).start()

        # Prime the pipeline at the start of each batch row.  Priming per row
        # keeps the prefetch chain self-contained, so sharding the (parallel)
        # batch axis across TensorCores (v7x megacore) stays correct.
        @pl.when(j == 0)
        def _():
            start_fetch(0, 0)

        # Prefetch the next tile of this row while computing the current one.
        @pl.when(j + 1 < nj)
        def _():
            start_fetch(j + 1, 1 - slot)

        # Wait for the current tile's window (descriptor only needs shape/sem).
        pltpu.make_async_copy(
            uph_hbm.at[b, :, pl.ds(0, win)], buf.at[slot], sem.at[slot]
        ).wait()

        bias = bias_ref[...]                       # (c_out, 1) f32, hoisted

        # Static sub-tile loop: n_sub sub-tiles of tl_sub lanes each.
        for s in range(n_sub):
            off = s * tl_sub                       # static, 128-aligned
            acc = jnp.zeros((c_out, tl_sub), jnp.float32)
            for m in range(m_off):                 # 4 phase offsets (K=7, stride 2)
                rhs = buf[slot, :, pl.ds(off + m, tl_sub)]   # (2*C_in_p, tl_sub) bf16
                acc = acc + jnp.dot(w_ref[m], rhs,
                                    preferred_element_type=jnp.float32)
            out_ref[0, :, pl.ds(off, tl_sub)] = jnp.maximum(acc + bias, 0.0)

    return kernel


@jax.jit
def encoder_forward(x, conv_w, conv_b, bn_gamma, bn_beta, bn_mean, bn_var):
    """x: (B, C_in, L) -> (B, 32, L_out), matching
    nn.Conv1d(C_in, 32, 7, stride=2, padding=3) + BatchNorm1d(32, eval) + ReLU."""
    x = x.astype(jnp.float32)
    B, C_in, L = x.shape
    C_out, _, K = conv_w.shape
    stride, pad = 2, K // 2
    L_out = (L + 2 * pad - K) // stride + 1

    # ---------------- output tiling (all lane dims multiples of 128) --------
    L_out_128 = _round_up(L_out, 128)
    tl_sub = min(512, L_out_128)                       # per-sub-tile lanes
    num_outer = _cdiv(L_out, 8 * tl_sub)               # grid steps along L
    n_sub = _cdiv(_cdiv(L_out, num_outer), tl_sub)     # sub-tiles per step
    tl_outer = n_sub * tl_sub                          # output lanes per step
    L_out_pad = num_outer * tl_outer
    win = tl_outer + 128                               # halo window (needs +3)
    Lu = L_out_pad + 128                               # padded phase length

    # ---------------- fold conv bias + eval BatchNorm into weights ----------
    scale = bn_gamma.astype(jnp.float32) * jax.lax.rsqrt(
        bn_var.astype(jnp.float32) + BN_EPS)                       # (C_out,)
    w_f = conv_w.astype(jnp.float32) * scale[:, None, None]        # (C_out,C_in,K)
    b_f = ((conv_b.astype(jnp.float32) - bn_mean.astype(jnp.float32)) * scale
           + bn_beta.astype(jnp.float32))                          # (C_out,)

    # Pair even/odd taps that share the same phase offset on the contraction dim.
    C_in_p = max(8, _round_up(C_in, 8))
    Kp = _round_up(K, 2)
    w_k = jnp.transpose(w_f, (2, 0, 1))                            # (K, C_out, C_in)
    w_k = jnp.pad(w_k, ((0, Kp - K), (0, 0), (0, C_in_p - C_in)))  # (Kp, C_out, C_in_p)
    w_stack = jnp.concatenate([w_k[0::2], w_k[1::2]], axis=-1)     # (Kp//2, C_out, 2*C_in_p)
    w_stack = w_stack.astype(jnp.bfloat16)
    m_off = w_stack.shape[0]                                       # 4 for K=7
    bias_col = b_f.reshape(C_out, 1)

    # --------- even/odd phase split of the zero-padded input (fused in jit) -
    # uph[:, 0:C_in, s]        = x_pad[:, :, 2s]
    # uph[:, C_in_p:C_in_p+C_in, s] = x_pad[:, :, 2s+1]
    x_pad = jnp.pad(x, ((0, 0), (0, 0), (pad, pad)))
    u0 = x_pad[:, :, 0::2]
    u1 = x_pad[:, :, 1::2]

    def _prep(u):
        return jnp.pad(u, ((0, 0), (0, C_in_p - C_in), (0, Lu - u.shape[2])))

    uph = jnp.concatenate([_prep(u0), _prep(u1)], axis=1).astype(jnp.bfloat16)

    kernel = _make_kernel(C_out, m_off, n_sub, tl_sub, tl_outer, win)

    out = pl.pallas_call(
        kernel,
        out_shape=jax.ShapeDtypeStruct((B, C_out, L_out_pad), jnp.float32),
        grid=(B, num_outer),
        in_specs=[
            pl.BlockSpec(memory_space=pl.ANY),                       # phase slab in HBM
            pl.BlockSpec((m_off, C_out, 2 * C_in_p), lambda b, j: (0, 0, 0)),
            pl.BlockSpec((C_out, 1), lambda b, j: (0, 0)),
        ],
        out_specs=pl.BlockSpec((1, C_out, tl_outer), lambda b, j: (b, 0, j)),
        scratch_shapes=[
            pltpu.VMEM((2, 2 * C_in_p, win), jnp.bfloat16),          # double buffer
            pltpu.SemaphoreType.DMA((2,)),
        ],
        # Total VMEM footprint ~1.3 MiB -> fits every generation's default
        # scoped-VMEM limit (v5e 16 MiB included); no vmem_limit override needed.
        compiler_params=pltpu.CompilerParams(
            dimension_semantics=("parallel", "arbitrary")),
    )(uph, w_stack, bias_col)

    return out if L_out_pad == L_out else out[:, :, :L_out]


def _reference_forward(x, conv_w, conv_b, bn_gamma, bn_beta, bn_mean, bn_var):
    # pure-JAX f32 reference (lax conv), for correctness check only
    y = jax.lax.conv_general_dilated(
        x.astype(jnp.float32), conv_w.astype(jnp.float32),
        window_strides=(2,), padding=((3, 3),),
        dimension_numbers=("NCH", "OIH", "NCH"))
    y = y + conv_b[None, :, None]
    scale = bn_gamma / jnp.sqrt(bn_var + BN_EPS)
    y = (y - bn_mean[None, :, None]) * scale[None, :, None] + bn_beta[None, :, None]
    return jnp.maximum(y, 0.0)


if __name__ == "__main__":
    C_in, C_out, K = 4, 32, 7

    key = jax.random.PRNGKey(0)
    kx, kw, kb, kg, kbeta, km, kv = jax.random.split(key, 7)

    conv_w = jax.random.normal(kw, (C_out, C_in, K), dtype=jnp.float32) * 0.1
    conv_b = jax.random.normal(kb, (C_out,), dtype=jnp.float32) * 0.1
    bn_gamma = 1.0 + 0.1 * jax.random.normal(kg, (C_out,), dtype=jnp.float32)
    bn_beta = 0.1 * jax.random.normal(kbeta, (C_out,), dtype=jnp.float32)
    bn_mean = 0.1 * jax.random.normal(km, (C_out,), dtype=jnp.float32)
    bn_var = jnp.abs(1.0 + 0.1 * jax.random.normal(kv, (C_out,), dtype=jnp.float32))

    # Small case (module-consistent), plus two larger cases exercising the
    # multi-sub-tile path and the per-row prefetch chain with L_out not a
    # multiple of 128.
    for (B, L) in [(2, 16), (2, 2000), (1, 9000)]:
        x = jax.random.normal(jax.random.fold_in(kx, L), (B, C_in, L),
                              dtype=jnp.float32)
        out = jax.block_until_ready(
            encoder_forward(x, conv_w, conv_b, bn_gamma, bn_beta, bn_mean, bn_var))
        ref = _reference_forward(x, conv_w, conv_b, bn_gamma, bn_beta,
                                 bn_mean, bn_var)
        L_out = (L + 2 * (K // 2) - K) // 2 + 1
        assert out.shape == (B, C_out, L_out), (out.shape, (B, C_out, L_out))
        err = float(jnp.max(jnp.abs(out - ref)))
        # bf16 MXU feeds (per perf review) vs f32 reference -> loosened tolerance.
        assert err < 5e-2, f"mismatch vs JAX reference at L={L}: max abs err {err}"

    print("KERNEL_OK")
</pallas_src>

<mosaic_0001>
module attributes {stable_mosaic.version = 11 : i64} {
  func.func @kernel(%arg0: i32, %arg1: i32, %arg2: memref<2x16x256xbf16, #tpu.memory_space<any>>, %arg3: memref<4x32x16xbf16, #tpu.memory_space<vmem>>, %arg4: memref<32x1xf32, #tpu.memory_space<vmem>>, %arg5: memref<1x32x128xf32, #tpu.memory_space<vmem>>, %arg6: memref<2x16x256xbf16, #tpu.memory_space<vmem>>, %arg7: memref<2x!tpu.dma_semaphore, #tpu.memory_space<semaphore_mem>>) attributes {dimension_semantics = [#tpu.dimension_semantics<parallel>, #tpu.dimension_semantics<arbitrary>], iteration_bounds = array<i64: 2, 1>, scalar_prefetch = 0 : i64, scratch_operands = 2 : i64, tpu.core_type = #tpu.core_type<tc>, window_params = [{}, {pipeline_mode = #tpu.pipeline_mode<synchronous>, transform_indices = @transform_1, window_bounds = array<i64: 4, 32, 16>}, {pipeline_mode = #tpu.pipeline_mode<synchronous>, transform_indices = @transform_2, window_bounds = array<i64: 32, 1>}, {transform_indices = @transform_3, window_bounds = array<i64: 1, 32, 128>}]} {
    %c2_i32 = arith.constant 2 : i32
    %c0_i32 = arith.constant 0 : i32
    %0 = arith.cmpi eq, %c2_i32, %c0_i32 : i32
    %c1_i32 = arith.constant 1 : i32
    %1 = arith.select %0, %c1_i32, %c2_i32 : i32
    %2 = arith.remsi %arg1, %1 : i32
    %c0_i32_0 = arith.constant 0 : i32
    %3 = arith.cmpi ne, %2, %c0_i32_0 : i32
    %c0_i32_1 = arith.constant 0 : i32
    %4 = arith.cmpi slt, %2, %c0_i32_1 : i32
    %c0_i32_2 = arith.constant 0 : i32
    %5 = arith.cmpi slt, %1, %c0_i32_2 : i32
    %6 = arith.xori %4, %5 : i1
    %7 = arith.andi %6, %3 : i1
    %8 = arith.addi %2, %1 : i32
    %9 = arith.select %7, %8, %2 : i32
    %c0_i32_3 = arith.constant 0 : i32
    %10 = arith.cmpi eq, %arg1, %c0_i32_3 : i32
    %11 = arith.extui %10 : i1 to i32
    %c0_i32_4 = arith.constant 0 : i32
    %12 = arith.cmpi ne, %11, %c0_i32_4 : i32
    scf.if %12 {
      %c0_i32_38 = arith.constant 0 : i32
      %c0_i32_39 = arith.constant 0 : i32
      %c0_i32_40 = arith.constant 0 : i32
      %c0_i32_41 = arith.constant 0 : i32
      %60 = tpu.memref_slice %arg2[%arg0, %c0_i32_40, %c0_i32_41] : memref<2x16x256xbf16, #tpu.memory_space<any>> -> memref<1x16x256xbf16, #tpu.memory_space<any>>
      %61 = tpu.memref_squeeze %60 : memref<1x16x256xbf16, #tpu.memory_space<any>> -> memref<16x256xbf16, #tpu.memory_space<any>>
      %c0_i32_42 = arith.constant 0 : i32
      %c0_i32_43 = arith.constant 0 : i32
      %62 = tpu.memref_slice %arg6[%c0_i32_38, %c0_i32_42, %c0_i32_43] : memref<2x16x256xbf16, #tpu.memory_space<vmem>> -> memref<1x16x256xbf16, #tpu.memory_space<vmem>>
      %63 = tpu.memref_squeeze %62 : memref<1x16x256xbf16, #tpu.memory_space<vmem>> -> memref<16x256xbf16, #tpu.memory_space<vmem>>
      %64 = tpu.memref_slice %arg7[%c0_i32_39] : memref<2x!tpu.dma_semaphore, #tpu.memory_space<semaphore_mem>> -> memref<1x!tpu.dma_semaphore, #tpu.memory_space<semaphore_mem>>
      %65 = tpu.memref_squeeze %64 : memref<1x!tpu.dma_semaphore, #tpu.memory_space<semaphore_mem>> -> memref<!tpu.dma_semaphore, #tpu.memory_space<semaphore_mem>>
      tpu.enqueue_dma source(%61 : memref<16x256xbf16, #tpu.memory_space<any>>) target(%63 : memref<16x256xbf16, #tpu.memory_space<vmem>>) target_semaphore(%65 : memref<!tpu.dma_semaphore, #tpu.memory_space<semaphore_mem>>)
    } else {
    }
    %c1_i32_5 = arith.constant 1 : i32
    %13 = arith.addi %arg1, %c1_i32_5 : i32
    %c1_i32_6 = arith.constant 1 : i32
    %14 = arith.cmpi slt, %13, %c1_i32_6 : i32
    %15 = arith.extui %14 : i1 to i32
    %c0_i32_7 = arith.constant 0 : i32
    %16 = arith.cmpi ne, %15, %c0_i32_7 : i32
    scf.if %16 {
      %c1_i32_38 = arith.constant 1 : i32
      %60 = arith.addi %arg1, %c1_i32_38 : i32
      %c1_i32_39 = arith.constant 1 : i32
      %61 = arith.subi %c1_i32_39, %9 : i32
      %c128_i32 = arith.constant 128 : i32
      %62 = arith.muli %60, %c128_i32 : i32
      %c0_i32_40 = arith.constant 0 : i32
      %63 = tpu.memref_slice %arg2[%arg0, %c0_i32_40, %62] : memref<2x16x256xbf16, #tpu.memory_space<any>> -> memref<1x16x256xbf16, #tpu.memory_space<any>>
      %64 = tpu.memref_squeeze %63 : memref<1x16x256xbf16, #tpu.memory_space<any>> -> memref<16x256xbf16, #tpu.memory_space<any>>
      %c0_i32_41 = arith.constant 0 : i32
      %c0_i32_42 = arith.constant 0 : i32
      %65 = tpu.memref_slice %arg6[%61, %c0_i32_41, %c0_i32_42] : memref<2x16x256xbf16, #tpu.memory_space<vmem>> -> memref<1x16x256xbf16, #tpu.memory_space<vmem>>
      %66 = tpu.memref_squeeze %65 : memref<1x16x256xbf16, #tpu.memory_space<vmem>> -> memref<16x256xbf16, #tpu.memory_space<vmem>>
      %67 = tpu.memref_slice %arg7[%61] : memref<2x!tpu.dma_semaphore, #tpu.memory_space<semaphore_mem>> -> memref<1x!tpu.dma_semaphore, #tpu.memory_space<semaphore_mem>>
      %68 = tpu.memref_squeeze %67 : memref<1x!tpu.dma_semaphore, #tpu.memory_space<semaphore_mem>> -> memref<!tpu.dma_semaphore, #tpu.memory_space<semaphore_mem>>
      tpu.enqueue_dma source(%64 : memref<16x256xbf16, #tpu.memory_space<any>>) target(%66 : memref<16x256xbf16, #tpu.memory_space<vmem>>) target_semaphore(%68 : memref<!tpu.dma_semaphore, #tpu.memory_space<semaphore_mem>>)
    } else {
    }
    %c0_i32_8 = arith.constant 0 : i32
    %c0_i32_9 = arith.constant 0 : i32
    %17 = tpu.memref_slice %arg2[%arg0, %c0_i32_8, %c0_i32_9] : memref<2x16x256xbf16, #tpu.memory_space<any>> -> memref<1x16x256xbf16, #tpu.memory_space<any>>
    %18 = tpu.memref_squeeze %17 : memref<1x16x256xbf16, #tpu.memory_space<any>> -> memref<16x256xbf16, #tpu.memory_space<any>>
    %c0_i32_10 = arith.constant 0 : i32
    %c0_i32_11 = arith.constant 0 : i32
    %19 = tpu.memref_slice %arg6[%9, %c0_i32_10, %c0_i32_11] : memref<2x16x256xbf16, #tpu.memory_space<vmem>> -> memref<1x16x256xbf16, #tpu.memory_space<vmem>>
    %20 = tpu.memref_squeeze %19 : memref<1x16x256xbf16, #tpu.memory_space<vmem>> -> memref<16x256xbf16, #tpu.memory_space<vmem>>
    %21 = tpu.memref_slice %arg7[%9] : memref<2x!tpu.dma_semaphore, #tpu.memory_space<semaphore_mem>> -> memref<1x!tpu.dma_semaphore, #tpu.memory_space<semaphore_mem>>
    %22 = tpu.memref_squeeze %21 : memref<1x!tpu.dma_semaphore, #tpu.memory_space<semaphore_mem>> -> memref<!tpu.dma_semaphore, #tpu.memory_space<semaphore_mem>>
    tpu.wait_dma2 semaphore(%22 : memref<!tpu.dma_semaphore, #tpu.memory_space<semaphore_mem>>) src(%18 : memref<16x256xbf16, #tpu.memory_space<any>>) dst(%20 : memref<16x256xbf16, #tpu.memory_space<vmem>>)
    %c0 = arith.constant 0 : index
    %c0_12 = arith.constant 0 : index
    %23 = vector.load %arg4[%c0, %c0_12] : memref<32x1xf32, #tpu.memory_space<vmem>>, vector<32x1xf32>
    %cst = arith.constant 0.000000e+00 : f32
    %24 = vector.broadcast %cst : f32 to vector<32x128xf32>
    %25 = arith.index_cast %9 : i32 to index
    %c0_13 = arith.constant 0 : index
    %c0_14 = arith.constant 0 : index
    %26 = vector.load %arg6[%25, %c0_13, %c0_14] : memref<2x16x256xbf16, #tpu.memory_space<vmem>>, vector<1x16x128xbf16>
    %27 = vector.shape_cast %26 : vector<1x16x128xbf16> to vector<16x128xbf16>
    %c0_15 = arith.constant 0 : index
    %c0_16 = arith.constant 0 : index
    %c0_17 = arith.constant 0 : index
    %28 = vector.load %arg3[%c0_15, %c0_16, %c0_17] : memref<4x32x16xbf16, #tpu.memory_space<vmem>>, vector<1x32x16xbf16>
    %29 = vector.shape_cast %28 : vector<1x32x16xbf16> to vector<32x16xbf16>
    %cst_18 = arith.constant dense<0.000000e+00> : vector<32x128xf32>
    %30 = tpu.matmul %29, %27, %cst_18 {dimension_numbers = #tpu.dot_dimension_numbers<[1], [0], [0], [1], [0, 0, 1, 1], [], []>} : vector<32x16xbf16>, vector<16x128xbf16>, vector<32x128xf32> -> vector<32x128xf32>
    %31 = arith.addf %24, %30 : vector<32x128xf32>
    %32 = arith.index_cast %9 : i32 to index
    %c0_19 = arith.constant 0 : index
    %c1 = arith.constant 1 : index
    %33 = vector.load %arg6[%32, %c0_19, %c1] : memref<2x16x256xbf16, #tpu.memory_space<vmem>>, vector<1x16x128xbf16>
    %34 = vector.shape_cast %33 : vector<1x16x128xbf16> to vector<16x128xbf16>
    %c1_20 = arith.constant 1 : index
    %c0_21 = arith.constant 0 : index
    %c0_22 = arith.constant 0 : index
    %35 = vector.load %arg3[%c1_20, %c0_21, %c0_22] : memref<4x32x16xbf16, #tpu.memory_space<vmem>>, vector<1x32x16xbf16>
    %36 = vector.shape_cast %35 : vector<1x32x16xbf16> to vector<32x16xbf16>
    %cst_23 = arith.constant dense<0.000000e+00> : vector<32x128xf32>
    %37 = tpu.matmul %36, %34, %cst_23 {dimension_numbers = #tpu.dot_dimension_numbers<[1], [0], [0], [1], [0, 0, 1, 1], [], []>} : vector<32x16xbf16>, vector<16x128xbf16>, vector<32x128xf32> -> vector<32x128xf32>
    %38 = arith.addf %31, %37 : vector<32x128xf32>
    %39 = arith.index_cast %9 : i32 to index
    %c0_24 = arith.constant 0 : index
    %c2 = arith.constant 2 : index
    %40 = vector.load %arg6[%39, %c0_24, %c2] : memref<2x16x256xbf16, #tpu.memory_space<vmem>>, vector<1x16x128xbf16>
    %41 = vector.shape_cast %40 : vector<1x16x128xbf16> to vector<16x128xbf16>
    %c2_25 = arith.constant 2 : index
    %c0_26 = arith.constant 0 : index
    %c0_27 = arith.constant 0 : index
    %42 = vector.load %arg3[%c2_25, %c0_26, %c0_27] : memref<4x32x16xbf16, #tpu.memory_space<vmem>>, vector<1x32x16xbf16>
    %43 = vector.shape_cast %42 : vector<1x32x16xbf16> to vector<32x16xbf16>
    %cst_28 = arith.constant dense<0.000000e+00> : vector<32x128xf32>
    %44 = tpu.matmul %43, %41, %cst_28 {dimension_numbers = #tpu.dot_dimension_numbers<[1], [0], [0], [1], [0, 0, 1, 1], [], []>} : vector<32x16xbf16>, vector<16x128xbf16>, vector<32x128xf32> -> vector<32x128xf32>
    %45 = arith.addf %38, %44 : vector<32x128xf32>
    %46 = arith.index_cast %9 : i32 to index
    %c0_29 = arith.constant 0 : index
    %c3 = arith.constant 3 : index
    %47 = vector.load %arg6[%46, %c0_29, %c3] : memref<2x16x256xbf16, #tpu.memory_space<vmem>>, vector<1x16x128xbf16>
    %48 = vector.shape_cast %47 : vector<1x16x128xbf16> to vector<16x128xbf16>
    %c3_30 = arith.constant 3 : index
    %c0_31 = arith.constant 0 : index
    %c0_32 = arith.constant 0 : index
    %49 = vector.load %arg3[%c3_30, %c0_31, %c0_32] : memref<4x32x16xbf16, #tpu.memory_space<vmem>>, vector<1x32x16xbf16>
    %50 = vector.shape_cast %49 : vector<1x32x16xbf16> to vector<32x16xbf16>
    %cst_33 = arith.constant dense<0.000000e+00> : vector<32x128xf32>
    %51 = tpu.matmul %50, %48, %cst_33 {dimension_numbers = #tpu.dot_dimension_numbers<[1], [0], [0], [1], [0, 0, 1, 1], [], []>} : vector<32x16xbf16>, vector<16x128xbf16>, vector<32x128xf32> -> vector<32x128xf32>
    %52 = arith.addf %45, %51 : vector<32x128xf32>
    %53 = vector.broadcast %23 : vector<32x1xf32> to vector<32x128xf32>
    %54 = arith.addf %52, %53 : vector<32x128xf32>
    %cst_34 = arith.constant 0.000000e+00 : f32
    %55 = vector.broadcast %cst_34 : f32 to vector<32x128xf32>
    %56 = arith.maximumf %54, %55 : vector<32x128xf32>
    %c0_35 = arith.constant 0 : index
    %c0_36 = arith.constant 0 : index
    %c0_37 = arith.constant 0 : index
    %57 = vector.load %arg5[%c0_35, %c0_36, %c0_37] : memref<1x32x128xf32, #tpu.memory_space<vmem>>, vector<1x32x128xf32>
    %58 = vector.shape_cast %57 : vector<1x32x128xf32> to vector<32x128xf32>
    %59 = vector.shape_cast %56 : vector<32x128xf32> to vector<1x32x128xf32>
    tpu.vector_store %arg5[%c0_35, %c0_36, %c0_37], %59 {strides = array<i32>} : memref<1x32x128xf32, #tpu.memory_space<vmem>>, vector<1x32x128xf32>,
    return
  }
  func.func @transform_1(%arg0: i32, %arg1: i32) -> (i32, i32, i32) {
    %c0_i32 = arith.constant 0 : i32
    %c0_i32_0 = arith.constant 0 : i32
    %c0_i32_1 = arith.constant 0 : i32
    %c0_i32_2 = arith.constant 0 : i32
    return %c0_i32, %c0_i32_0, %c0_i32_1 : i32, i32, i32
  }
  func.func @transform_2(%arg0: i32, %arg1: i32) -> (i32, i32) {
    %c0_i32 = arith.constant 0 : i32
    %c0_i32_0 = arith.constant 0 : i32
    %c0_i32_1 = arith.constant 0 : i32
    return %c0_i32, %c0_i32_0 : i32, i32
  }
  func.func @transform_3(%arg0: i32, %arg1: i32) -> (i32, i32, i32) {
    %c0_i32 = arith.constant 0 : i32
    %c0_i32_0 = arith.constant 0 : i32
    return %arg0, %c0_i32, %arg1 : i32, i32, i32
  }
}

</mosaic_0001>

<llo_original>
// kernel: encoder_forward.1
$region0: #{encoder_forward.1}
  #allocation0 [shape = 'u32[]', space=smem, size = 0x4, offset = 0x4, fixed_abs, tag = 'smem constant byte address 0x4 - core index']
  #allocation1 [shape = 'u32[144,128]{1,0:T(1,128)}', space=vmem, size = 0x12000, scoped, tag = 'internal scratch']
  #allocation2 [shape = 'bf16[2,16,256]{2,1,0:T(16,128)(2,1)}', space=vmem, size = 0x4000, scoped, tag = 'scratch operand']
  #allocation3 [shape = 's32[2]{0}', space=sflag, size = 0x8, scoped, tag = 'scratch operand']
  #allocation4 [shape = 's32[]', space=sflag, size = 0x4, offset = 0, fixed_abs, tag = 'sflag constant byte address 0x0 - dummy sync flag']
  #allocation5 [shape = 's32[]', space=sflag, size = 0x4, offset = 0, fixed_abs, tag = 'sflag constant byte address 0x0 - dummy sync flag']
  %s0 = inlined_call_operand.vmem [shape: bf16[2,16,256], index: 0, kind: input, shape index: {}]
  %s1 = inlined_call_operand.vmem [shape: bf16[4,32,16], index: 1, kind: input, shape index: {}]
  %s2 = inlined_call_operand.vmem [shape: f32[32,1], index: 2, kind: input, shape index: {}]
  %s3 = inlined_call_operand.vmem [shape: f32[2,32,128], index: 3, kind: output, shape index: {}]
  %s4 = sld [smem:[#allocation0]]
  $region123: #{encoder_forward.1} parent=0
    _
  %s6 = ssub.s32 1, %s4
  %s7 = scalar_select 0, %s6, %s4
  loop: start=0, step=1, limit=4
  $region2: #{encoder_forward.1} parent=0 // loop_pre_header
    _
  $region3: #{encoder_forward.1} parent=0 // loop_header
    %s9 = sphi 0, %s13
    %p10 = scmp.ge.s32.totalorder %s9, 4
    %s16 = sphi 0, %s28
    %s17 = sphi 0, %s24
    %s18 = sphi 0, %s16
    %s19 = sphi 0, %s17
    %s20 = sphi 0, %s18
    %s21 = sphi 0, %s19
    %s29 = sphi 0, %s29
    %s31 = sphi 0, %s29
    %s32 = sphi 0, %s31
    %s46 = sphi 0, %s32
    %s50 = sphi 0, %s50
    %s52 = sphi 0, %s50
    %s53 = sphi 0, %s52
    %s67 = sphi 0, %s53
    %s75 = sphi 0, %s77
    %s78 = sphi 0, %s75
    %s79 = sphi 0, %s78
    %s95 = sphi 0, %s79
  $region4: #{encoder_forward.1} parent=0 // loop_header_branch
    %12 = sbr.rel (%p10) target = $region8
  $region5: #{encoder_forward.1} parent=0 // loop_body
    %s14 = ssub.s32 %s9, 1
    %s15 = ssub.s32 %s9, 2
    %s22 = sadd.s32 1, %s17
    %p23 = scmp.ge.s32.totalorder %s22, 1
    %s24 = scalar_select %p23, 0, %s22
    %s25 = sadd.s32 1, %s16
    %s26 = scalar_select %p23, %s25, %s16
    %p27 = scmp.ge.s32.totalorder %s26, 2
    %s28 = scalar_select %p27, 0, %s26
    %s30 = sadd.s32 %s29, 1
    %p33 = scmp.eq.s32.totalorder %s9, 1
    %p34 = scmp.ne.s32.totalorder %s29, %s31
    %p35 = scmp.eq.s32.totalorder %s9, 0
    %p36 = por %p34, %p35
    %p37 = scmp.ne.s32.totalorder %s29, %s31
    %p38 = scmp.eq.s32.totalorder %s14, 1
    %p39 = por %p37, %p38
    %p40 = scmp.ne.s32.totalorder %s31, %s32
    %p41 = scmp.eq.s32.totalorder %s14, 0
    %p42 = por %p40, %p41
    %p43 = scmp.ne.s32.totalorder %s31, %s32
    %p44 = scmp.eq.s32.totalorder %s15, 1
    %p45 = por %p43, %p44
    %p47 = scmp.ne.s32.totalorder %s32, %s46
    %p48 = scmp.eq.s32.totalorder %s15, 0
    %p49 = por %p47, %p48
    %s51 = sadd.s32 %s50, 1
    %p54 = scmp.eq.s32.totalorder %s9, 1
    %p55 = scmp.ne.s32.totalorder %s50, %s52
    %p56 = scmp.eq.s32.totalorder %s9, 0
    %p57 = por %p55, %p56
    %p58 = scmp.ne.s32.totalorder %s50, %s52
    %p59 = scmp.eq.s32.totalorder %s14, 1
    %p60 = por %p58, %p59
    %p61 = scmp.ne.s32.totalorder %s52, %s53
    %p62 = scmp.eq.s32.totalorder %s14, 0
    %p63 = por %p61, %p62
    %p64 = scmp.ne.s32.totalorder %s52, %s53
    %p65 = scmp.eq.s32.totalorder %s15, 1
    %p66 = por %p64, %p65
    %p68 = scmp.ne.s32.totalorder %s53, %s67
    %p69 = scmp.eq.s32.totalorder %s15, 0
    %p70 = por %p68, %p69
    %s71 = ssub.s32 %s16, %s28
    %s72 = ssub.s32 %s17, %s24
    %s73 = sor.u32 %s71, %s72
    %p74 = scmp.eq.s32.totalorder %s73, 0
    %s76 = sadd.s32 %s75, 1
    %s77 = scalar_select %p74, %s75, %s76
    %p80 = pneg %p74
    %p81 = scmp.eq.s32.totalorder %s9, 1
    %p82 = por %p80, %p81
    %p83 = scmp.ne.s32.totalorder %s75, %s78
    %p84 = scmp.eq.s32.totalorder %s9, 0
    %p85 = por %p83, %p84
    %p86 = scmp.ne.s32.totalorder %s75, %s78
    %p87 = scmp.eq.s32.totalorder %s14, 1
    %p88 = por %p86, %p87
    %p89 = scmp.ne.s32.totalorder %s78, %s79
    %p90 = scmp.eq.s32.totalorder %s14, 0
    %p91 = por %p89, %p90
    %p92 = scmp.ne.s32.totalorder %s78, %s79
    %p93 = scmp.eq.s32.totalorder %s15, 1
    %p94 = por %p92, %p93
    %p96 = scmp.ne.s32.totalorder %s79, %s95
    %p97 = scmp.eq.s32.totalorder %s15, 0
    %p98 = por %p96, %p97
    %p99 = scmp.le.s32.totalorder 1, %s9
    %p100 = scmp.lt.s32.totalorder %s9, 3
    %p101 = pnand %p99, %p100
    %p102 = pneg %p101
    // Predicated region
    $region9: #{encoder_forward.1} parent=5 // pred_check
      _
    $region10: #{encoder_forward.1} parent=5 // pred_check_branch
      %104 = sbr.rel (%p101) target = $region12
    $region11: #{encoder_forward.1} parent=5 // pred_region
      %s105 = ssub.s32 %s9, 1
      // Predicated region
      $region13: #{encoder_forward.1} parent=11 // pred_check
        %p106 = pneg %p42
      $region14: #{encoder_forward.1} parent=11 // pred_check_branch
        %108 = sbr.rel (%p106) target = $region16
      $region15: #{encoder_forward.1} parent=11 // pred_region
        _
      $region16: #{encoder_forward.1} parent=11 // pred_fallthru
        _
      // Predicated region
      $region17: #{encoder_forward.1} parent=11 // pred_check
        %p109 = pneg %p63
      $region18: #{encoder_forward.1} parent=11 // pred_check_branch
        %111 = sbr.rel (%p109) target = $region20
      $region19: #{encoder_forward.1} parent=11 // pred_region
        _
      $region20: #{encoder_forward.1} parent=11 // pred_fallthru
        _
    $region12: #{encoder_forward.1} parent=5 // pred_fallthru
      _
    %p112 = scmp.lt.s32.totalorder %s9, 2
    // Predicated region
    $region21: #{encoder_forward.1} parent=5 // pred_check
      %p113 = pneg %p112
    $region22: #{encoder_forward.1} parent=5 // pred_check_branch
      %115 = sbr.rel (%p113) target = $region24
    $region23: #{encoder_forward.1} parent=5 // pred_region
      _
    $region24: #{encoder_forward.1} parent=5 // pred_fallthru
      _
    %p116 = scmp.le.s32.totalorder 1, %s9
    %p117 = scmp.lt.s32.totalorder %s9, 3
    %p118 = pnand %p116, %p117
    %p119 = pneg %p118
    // Predicated region
    $region25: #{encoder_forward.1} parent=5 // pred_check
      _
    $region26: #{encoder_forward.1} parent=5 // pred_check_branch
      %121 = sbr.rel (%p118) target = $region28
    $region27: #{encoder_forward.1} parent=5 // pred_region
      %s122 = ssub.s32 %s9, 1
      %p123 = pneg %p42
      %p124 = pneg %p39
      %p125 = pneg %p63
      %p126 = pneg %p60
      %p127 = pneg %p91
      %p128 = pneg %p88
      %p129 = scmp.lt.s32.totalorder %s18, 1
      %s130 = scalar_select %p129, %s18, 1
      %p131 = scmp.lt.s32.totalorder %s19, 0
      %s132 = scalar_select %p131, %s19, 0
      %s133 = smul.addr %s130, 4
      %s134 = sadd.s32 %s132, %s133
      %s135 = smul.addr %s134, 8
      %s136 = scalar_lea.vmem %s3, %s135
      %p137 = scmp.lt.s32.totalorder %s18, 1
      %s138 = scalar_select %p137, %s18, 1
      %p139 = scmp.lt.s32.totalorder %s19, 0
      %s140 = scalar_select %p139, %s19, 0
      %s141 = smul.addr %s138, 4
      %s142 = sadd.s32 %s140, %s141
      %s143 = smul.addr %s142, 8
      %s144 = scalar_lea.vmem %s3, %s143
      %p146 = scmp.lt.s32.totalorder %s19, 0
      %s147 = ssub.s32 0, %s19
      %s148 = scalar_select %p146, %s147, %s19
      %s149 = sand.u32 %s148, 1
      %s150 = ssub.s32 0, %s149
      %s151 = scalar_select %p146, %s150, %s149
      %p152 = scmp.ne.s32.totalorder %s151, 0
      %p153 = scmp.lt.s32.totalorder %s151, 0
      %p154 = pnand %p153, %p152
      %p155 = pneg %p154
      %s156 = sadd.s32 %s151, 2
      %s157 = scalar_select %p155, %s156, %s151
      %p158 = scmp.eq.s32.totalorder %s19, 0
      // Predicated region
      $region29: #{encoder_forward.1} parent=27 // pred_check
        %p159 = pneg %p158
      $region30: #{encoder_forward.1} parent=27 // pred_check_branch
        %161 = sbr.rel (%p159) target = $region32
      $region31: #{encoder_forward.1} parent=27 // pred_region
        %s162 = smul.u32 %s18, 4
        %s163 = smul.addr %s162, 4
        %s164 = scalar_lea.vmem %s0, %s163
        %p166 = scmp.lt.u32.totalorder 4, 8
        %p167 = pneg %p166
        // Predicated region
        $region33: #{encoder_forward.1} parent=31 // pred_check
          _
        $region34: #{encoder_forward.1} parent=31 // pred_check_branch
          %169 = sbr.rel (%p166) target = $region36
        $region35: #{encoder_forward.1} parent=31 // pred_region
          %s190 = sand.u32 4, 7
          %p191 = scmp.eq.s32.totalorder %s190, 0
          %p192 = pneg %p191
          // Predicated region
          $region48: #{encoder_forward.1} parent=35 // pred_check
            _
          $region49: #{encoder_forward.1} parent=35 // pred_check_branch
            %194 = sbr.rel (%p191) target = $region51
          $region50: #{encoder_forward.1} parent=35 // pred_region
            %s195 = sand.u32 4, 7
            %s196 = ssub.s32 4, %s195
            %s197 = scalar_lea.vmem %s164, %s196
            %s198 = ssub.s32 4, %s195
            %s199 = scalar_lea.vmem [#allocation2], %s198
            loop: start=0, step=1, limit=1
            $region52: #{encoder_forward.1} parent=50 // loop_pre_header
              _
            $region53: #{encoder_forward.1} parent=50 // loop_header
              %s201 = sphi 0, %s205
              %p202 = scmp.ge.s32.totalorder %s201, 1
              %s206 = sphi %s164, %s164
              %s207 = sphi [#allocation2], [#allocation2]
            $region54: #{encoder_forward.1} parent=50 // loop_header_branch
              %204 = sbr.rel (%p202) target = $region58
            $region55: #{encoder_forward.1} parent=50 // loop_body
              _
            $region56: #{encoder_forward.1} parent=50 // loop_footer
              %s205 = sadd.s32 1, %s201
            $region57: #{encoder_forward.1} parent=50 // loop_footer_branch
              %200 = sbr.rel target = $region53
            $region58: #{encoder_forward.1} parent=50 // loop_exit
              _
            %s208 = sshllo.u32 0, %s195
            loop: start=0, step=1, limit=1
            $region59: #{encoder_forward.1} parent=50 // loop_pre_header
              _
            $region60: #{encoder_forward.1} parent=50 // loop_header
              %s210 = sphi 0, %s214
              %p211 = scmp.ge.s32.totalorder %s210, 1
              %s215 = sphi %s197, %s197
              %s216 = sphi %s199, %s199
            $region61: #{encoder_forward.1} parent=50 // loop_header_branch
              %213 = sbr.rel (%p211) target = $region65
            $region62: #{encoder_forward.1} parent=50 // loop_body
              %v217 = vld [vmem:[%s215] sm:%s208]
              %218 = vst [vmem:[%s216] sm:%s208] %v217
              %v219 = vld [vmem:[%s215 + $0x8] sm:%s208]
              %220 = vst [vmem:[%s216 + $0x4] sm:%s208] %v219
              %v221 = vld [vmem:[%s215 + $0x4] sm:%s208]
              %222 = vst [vmem:[%s216 + $0x8] sm:%s208] %v221
              %v223 = vld [vmem:[%s215 + $0xc] sm:%s208]
              %224 = vst [vmem:[%s216 + $0xc] sm:%s208] %v223
            $region63: #{encoder_forward.1} parent=50 // loop_footer
              %s214 = sadd.s32 1, %s210
            $region64: #{encoder_forward.1} parent=50 // loop_footer_branch
              %209 = sbr.rel target = $region60
            $region65: #{encoder_forward.1} parent=50 // loop_exit
              _
          $region51: #{encoder_forward.1} parent=35 // pred_fallthru
            _
        $region36: #{encoder_forward.1} parent=31 // pred_fallthru
          _
        // Predicated region
        $region37: #{encoder_forward.1} parent=31 // pred_check
          %p170 = pneg %p166
        $region38: #{encoder_forward.1} parent=31 // pred_check_branch
          %172 = sbr.rel (%p170) target = $region40
        $region39: #{encoder_forward.1} parent=31 // pred_region
          %s173 = sshllo.u32 0, 4
          loop: start=0, step=1, limit=1
          $region41: #{encoder_forward.1} parent=39 // loop_pre_header
            _
          $region42: #{encoder_forward.1} parent=39 // loop_header
            %s175 = sphi 0, %s179
            %p176 = scmp.ge.s32.totalorder %s175, 1
            %s180 = sphi %s164, %s164
            %s181 = sphi [#allocation2], [#allocation2]
          $region43: #{encoder_forward.1} parent=39 // loop_header_branch
            %178 = sbr.rel (%p176) target = $region47
          $region44: #{encoder_forward.1} parent=39 // loop_body
            %v182 = vld [vmem:[%s180] sm:%s173]
            %183 = vst [vmem:[%s181] sm:%s173] %v182
            %v184 = vld [vmem:[%s180 + $0x8] sm:%s173]
            %185 = vst [vmem:[%s181 + $0x4] sm:%s173] %v184
            %v186 = vld [vmem:[%s180 + $0x4] sm:%s173]
            %187 = vst [vmem:[%s181 + $0x8] sm:%s173] %v186
            %v188 = vld [vmem:[%s180 + $0xc] sm:%s173]
            %189 = vst [vmem:[%s181 + $0xc] sm:%s173] %v188
          $region45: #{encoder_forward.1} parent=39 // loop_footer
            %s179 = sadd.s32 1, %s175
          $region46: #{encoder_forward.1} parent=39 // loop_footer_branch
            %174 = sbr.rel target = $region42
          $region47: #{encoder_forward.1} parent=39 // loop_exit
            _
        $region40: #{encoder_forward.1} parent=31 // pred_fallthru
          _
        // Predicated region
        $region66: #{encoder_forward.1} parent=31 // pred_check
          _
        $region67: #{encoder_forward.1} parent=31 // pred_check_branch
          %227 = sbr.rel (0) target = $region69
        $region68: #{encoder_forward.1} parent=31 // pred_region
          %228 = vsyncadd [#allocation3], 256
        $region69: #{encoder_forward.1} parent=31 // pred_fallthru
          _
      $region32: #{encoder_forward.1} parent=27 // pred_fallthru
        _
      %s229 = sadd.s32 %s19, 1
      %p230 = scmp.lt.s32.totalorder %s229, 1
      // Predicated region
      $region70: #{encoder_forward.1} parent=27 // pred_check
        %p231 = pneg %p230
      $region71: #{encoder_forward.1} parent=27 // pred_check_branch
        %233 = sbr.rel (%p231) target = $region73
      $region72: #{encoder_forward.1} parent=27 // pred_region
        %s234 = ssub.s32 1, %s157
        %s235 = smul.u32 %s229, 128
        %s236 = sshra.s32 %s235, 7
        %s237 = sand.u32 %s235, 127
        %s238 = smul.u32 %s18, 4
        %s239 = sadd.s32 %s236, %s238
        %s240 = smul.addr %s239, 4
        %s241 = scalar_lea.vmem %s0, %s240
        %s242 = smul.u32 %s234, 2
        %s243 = smul.addr %s242, 8
        %s244 = scalar_lea.vmem [#allocation2], %s243
        %s245 = scalar_lea.sflag [#allocation3], %s234
        %p247 = scmp.lt.u32.totalorder 4, 8
        %p248 = pneg %p247
        // Predicated region
        $region74: #{encoder_forward.1} parent=72 // pred_check
          _
        $region75: #{encoder_forward.1} parent=72 // pred_check_branch
          %250 = sbr.rel (%p247) target = $region77
        $region76: #{encoder_forward.1} parent=72 // pred_region
          %s271 = sand.u32 4, 7
          %p272 = scmp.eq.s32.totalorder %s271, 0
          %p273 = pneg %p272
          // Predicated region
          $region89: #{encoder_forward.1} parent=76 // pred_check
            _
          $region90: #{encoder_forward.1} parent=76 // pred_check_branch
            %275 = sbr.rel (%p272) target = $region92
          $region91: #{encoder_forward.1} parent=76 // pred_region
            %s276 = sand.u32 4, 7
            %s277 = ssub.s32 4, %s276
            %s278 = scalar_lea.vmem %s241, %s277
            %s279 = ssub.s32 4, %s276
            %s280 = scalar_lea.vmem %s244, %s279 [#allocation2]
            loop: start=0, step=1, limit=1
            $region93: #{encoder_forward.1} parent=91 // loop_pre_header
              _
            $region94: #{encoder_forward.1} parent=91 // loop_header
              %s282 = sphi 0, %s286
              %p283 = scmp.ge.s32.totalorder %s282, 1
              %s287 = sphi %s241, %s241
              %s288 = sphi %s244, %s244
            $region95: #{encoder_forward.1} parent=91 // loop_header_branch
              %285 = sbr.rel (%p283) target = $region99
            $region96: #{encoder_forward.1} parent=91 // loop_body
              _
            $region97: #{encoder_forward.1} parent=91 // loop_footer
              %s286 = sadd.s32 1, %s282
            $region98: #{encoder_forward.1} parent=91 // loop_footer_branch
              %281 = sbr.rel target = $region94
            $region99: #{encoder_forward.1} parent=91 // loop_exit
              _
            %s289 = sshllo.u32 0, %s276
            loop: start=0, step=1, limit=1
            $region100: #{encoder_forward.1} parent=91 // loop_pre_header
              _
            $region101: #{encoder_forward.1} parent=91 // loop_header
              %s291 = sphi 0, %s295
              %p292 = scmp.ge.s32.totalorder %s291, 1
              %s296 = sphi %s278, %s278
              %s297 = sphi %s280, %s280
            $region102: #{encoder_forward.1} parent=91 // loop_header_branch
              %294 = sbr.rel (%p292) target = $region106
            $region103: #{encoder_forward.1} parent=91 // loop_body
              %v298 = vld [vmem:[%s296] sm:%s289]
              %299 = vst [vmem:[%s297] sm:%s289] %v298
              %v300 = vld [vmem:[%s296 + $0x8] sm:%s289]
              %301 = vst [vmem:[%s297 + $0x4] sm:%s289] %v300
              %v302 = vld [vmem:[%s296 + $0x4] sm:%s289]
              %303 = vst [vmem:[%s297 + $0x8] sm:%s289] %v302
              %v304 = vld [vmem:[%s296 + $0xc] sm:%s289]
              %305 = vst [vmem:[%s297 + $0xc] sm:%s289] %v304
            $region104: #{encoder_forward.1} parent=91 // loop_footer
              %s295 = sadd.s32 1, %s291
            $region105: #{encoder_forward.1} parent=91 // loop_footer_branch
              %290 = sbr.rel target = $region101
            $region106: #{encoder_forward.1} parent=91 // loop_exit
              _
          $region92: #{encoder_forward.1} parent=76 // pred_fallthru
            _
        $region77: #{encoder_forward.1} parent=72 // pred_fallthru
          _
        // Predicated region
        $region78: #{encoder_forward.1} parent=72 // pred_check
          %p251 = pneg %p247
        $region79: #{encoder_forward.1} parent=72 // pred_check_branch
          %253 = sbr.rel (%p251) target = $region81
        $region80: #{encoder_forward.1} parent=72 // pred_region
          %s254 = sshllo.u32 0, 4
          loop: start=0, step=1, limit=1
          $region82: #{encoder_forward.1} parent=80 // loop_pre_header
            _
          $region83: #{encoder_forward.1} parent=80 // loop_header
            %s256 = sphi 0, %s260
            %p257 = scmp.ge.s32.totalorder %s256, 1
            %s261 = sphi %s241, %s241
            %s262 = sphi %s244, %s244
          $region84: #{encoder_forward.1} parent=80 // loop_header_branch
            %259 = sbr.rel (%p257) target = $region88
          $region85: #{encoder_forward.1} parent=80 // loop_body
            %v263 = vld [vmem:[%s261] sm:%s254]
            %264 = vst [vmem:[%s262] sm:%s254] %v263
            %v265 = vld [vmem:[%s261 + $0x8] sm:%s254]
            %266 = vst [vmem:[%s262 + $0x4] sm:%s254] %v265
            %v267 = vld [vmem:[%s261 + $0x4] sm:%s254]
            %268 = vst [vmem:[%s262 + $0x8] sm:%s254] %v267
            %v269 = vld [vmem:[%s261 + $0xc] sm:%s254]
            %270 = vst [vmem:[%s262 + $0xc] sm:%s254] %v269
          $region86: #{encoder_forward.1} parent=80 // loop_footer
            %s260 = sadd.s32 1, %s256
          $region87: #{encoder_forward.1} parent=80 // loop_footer_branch
            %255 = sbr.rel target = $region83
          $region88: #{encoder_forward.1} parent=80 // loop_exit
            _
        $region81: #{encoder_forward.1} parent=72 // pred_fallthru
          _
        // Predicated region
        $region107: #{encoder_forward.1} parent=72 // pred_check
          _
        $region108: #{encoder_forward.1} parent=72 // pred_check_branch
          %308 = sbr.rel (0) target = $region110
        $region109: #{encoder_forward.1} parent=72 // pred_region
          %309 = vsyncadd %s245, 256
        $region110: #{encoder_forward.1} parent=72 // pred_fallthru
          _
      $region73: #{encoder_forward.1} parent=27 // pred_fallthru
        _
      %s310 = smul.u32 %s157, 2
      %s311 = smul.addr %s310, 8
      %s312 = scalar_lea.vmem [#allocation2], %s311
      %s313 = scalar_lea.sflag [#allocation3], %s157
      %s314 = smul.u32 4, 2
      %s315 = smul.u32 %s314, 2
      %s316 = sshll.u32 %s315, 4
      %317 = dma.done %s313, %s316
      %v318 = vld [vmem:[%s2] sm:$0xff]
      %v319 = vld [vmem:[%s2 + $0x8] sm:$0xff]
      %v320 = vld [vmem:[%s2 + $0x10] sm:$0xff]
      %v321 = vld [vmem:[%s2 + $0x18] sm:$0xff]
      %v322 = vld [vmem:[%s312] sm:$0xff]
      %v323 = vld [vmem:[%s1] sm:$0xf]
      %v324 = vld [vmem:[%s1 + $0x4] sm:$0xf]
      %v325 = vld [vmem:[%s1 + $0x8] sm:$0xf]
      %v326 = vld [vmem:[%s1 + $0xc] sm:$0xf]
      %v327 = vld [vmem:[%s312 + $0x8] sm:$0xff]
      %s328 = scalar_lea.vmem %s1, 16
      %v329 = vld [vmem:[%s328] sm:$0xf]
      %v330 = vld [vmem:[%s328 + $0x4] sm:$0xf]
      %v331 = vld [vmem:[%s328 + $0x8] sm:$0xf]
      %v332 = vld [vmem:[%s328 + $0xc] sm:$0xf]
      %v337 = vunpack.c.l.b16 %v329
      %v338 = vunpack.c.l.b16 %v330
      %v339 = vunpack.c.l.b16 %v331
      %v340 = vunpack.c.l.b16 %v332
      %v341 = vpack.c.b16 %v338, %v337
      %v342 = vpack.c.b16 %v340, %v339
      %345 = vrot.lane.b32.xlu0 %v322, 127
      %v346 = vpop.permute.xlu0 %345
      %347 = vrot.lane.b32.xlu0 %v327, 127
      %v348 = vpop.permute.xlu0 %347
      %vm349 = vcmask 1039360
      %v350 = vsel %vm349, %v346, %v348
      %vm352 = vcmask 130048
      %v354 = vsel %vm352, %v341, 0
      %v357 = vsel %vm352, %v342, 0
      %359 = vmatprep.subr.bf16.mxu0 0
      %360 = vmatpush1.bf16.msra.mxu0 %v350
      %361 = vmatprep.subr.bf16.mxu0 0
      %362 = vmatpush1.bf16.msra.mxu0 0
      %363 = vmatprep.subr.bf16.mxu0 0
      %364 = vmatpush1.bf16.msra.mxu0 0
      %365 = vmatprep.subr.bf16.mxu0 0
      %366 = vmatpush1.bf16.msra.mxu0 0
      %367 = vmatprep.subr.bf16.mxu0 0
      %368 = vmatpush1.bf16.msra.mxu0 0
      %369 = vmatprep.subr.bf16.mxu0 0
      %370 = vmatpush1.bf16.msra.mxu0 0
      %371 = vmatprep.subr.bf16.mxu0 0
      %372 = vmatpush1.bf16.msra.mxu0 0
      %373 = vmatprep.subr.bf16.mxu0 0
      %374 = vmatpush1.bf16.msra.mxu0 0
      %375 = vmatprep.subr.bf16.mxu0 0
      %376 = vmatpush1.bf16.msra.mxu0 0
      %377 = vmatprep.subr.bf16.mxu0 0
      %378 = vmatpush1.bf16.msra.mxu0 0
      %379 = vmatprep.subr.bf16.mxu0 0
      %380 = vmatpush1.bf16.msra.mxu0 0
      %381 = vmatprep.subr.bf16.mxu0 0
      %382 = vmatpush1.bf16.msra.mxu0 0
      %383 = vmatprep.subr.bf16.mxu0 0
      %384 = vmatpush1.bf16.msra.mxu0 0
      %385 = vmatprep.subr.bf16.mxu0 0
      %386 = vmatpush1.bf16.msra.mxu0 0
      %387 = vmatprep.subr.bf16.mxu0 0
      %388 = vmatpush1.bf16.msra.mxu0 0
      %389 = vmatprep.subr.bf16.mxu0 0
      %390 = vmatpush1.bf16.msra.mxu0 0
      %391 = vmatprep.mubr.bf16.mxu0 0
      %392 = vmatmul.mubr.bf16.gmra.mrb[0].mxu0 %v354
      %v393 = vpop.f32.mrb[0].mxu0
      %v394 = vadd.f32 0.0, %v393
      %v395 = vpop.f32.mrb[0].mxu0
      %v396 = vpop.f32.mrb[0].mxu0
      %v397 = vadd.f32 0.0, %v396
      %v398 = vpop.f32.mrb[0].mxu0
      %399 = vmatprep.mubr.bf16.mxu0 0
      %400 = vmatmul.mubr.bf16.gmra.mrb[0].mxu0 %v357
      %v401 = vpop.f32.mrb[0].mxu0
      %v402 = vadd.f32 0.0, %v401
      %v403 = vpop.f32.mrb[0].mxu0
      %v404 = vpop.f32.mrb[0].mxu0
      %v405 = vadd.f32 0.0, %v404
      %v406 = vpop.f32.mrb[0].mxu0
      %407 = vdwg.mxu0
      %v412 = vunpack.c.l.b16 %v323
      %v413 = vunpack.c.l.b16 %v324
      %v414 = vunpack.c.l.b16 %v325
      %v415 = vunpack.c.l.b16 %v326
      %v416 = vpack.c.b16 %v413, %v412
      %v417 = vpack.c.b16 %v415, %v414
      %v419 = vsel %vm352, %v416, 0
      %v422 = vsel %vm352, %v417, 0
      %424 = vmatprep.subr.bf16.mxu0 0
      %425 = vmatpush1.bf16.msra.mxu0 %v322
      %426 = vmatprep.subr.bf16.mxu0 0
      %427 = vmatpush1.bf16.msra.mxu0 0
      %428 = vmatprep.subr.bf16.mxu0 0
      %429 = vmatpush1.bf16.msra.mxu0 0
      %430 = vmatprep.subr.bf16.mxu0 0
      %431 = vmatpush1.bf16.msra.mxu0 0
      %432 = vmatprep.subr.bf16.mxu0 0
      %433 = vmatpush1.bf16.msra.mxu0 0
      %434 = vmatprep.subr.bf16.mxu0 0
      %435 = vmatpush1.bf16.msra.mxu0 0
      %436 = vmatprep.subr.bf16.mxu0 0
      %437 = vmatpush1.bf16.msra.mxu0 0
      %438 = vmatprep.subr.bf16.mxu0 0
      %439 = vmatpush1.bf16.msra.mxu0 0
      %440 = vmatprep.subr.bf16.mxu0 0
      %441 = vmatpush1.bf16.msra.mxu0 0
      %442 = vmatprep.subr.bf16.mxu0 0
      %443 = vmatpush1.bf16.msra.mxu0 0
      %444 = vmatprep.subr.bf16.mxu0 0
      %445 = vmatpush1.bf16.msra.mxu0 0
      %446 = vmatprep.subr.bf16.mxu0 0
      %447 = vmatpush1.bf16.msra.mxu0 0
      %448 = vmatprep.subr.bf16.mxu0 0
      %449 = vmatpush1.bf16.msra.mxu0 0
      %450 = vmatprep.subr.bf16.mxu0 0
      %451 = vmatpush1.bf16.msra.mxu0 0
      %452 = vmatprep.subr.bf16.mxu0 0
      %453 = vmatpush1.bf16.msra.mxu0 0
      %454 = vmatprep.subr.bf16.mxu0 0
      %455 = vmatpush1.bf16.msra.mxu0 0
      %456 = vmatprep.mubr.bf16.mxu0 0
      %457 = vmatmul.mubr.bf16.gmra.mrb[0].mxu0 %v419
      %v458 = vpop.f32.mrb[0].mxu0
      %v459 = vadd.f32 %v394, %v458
      %v460 = vpop.f32.mrb[0].mxu0
      %v461 = vpop.f32.mrb[0].mxu0
      %v462 = vadd.f32 %v397, %v461
      %v463 = vpop.f32.mrb[0].mxu0
      %464 = vmatprep.mubr.bf16.mxu0 0
      %465 = vmatmul.mubr.bf16.gmra.mrb[0].mxu0 %v422
      %v466 = vpop.f32.mrb[0].mxu0
      %v467 = vadd.f32 %v402, %v466
      %v468 = vpop.f32.mrb[0].mxu0
      %v469 = vpop.f32.mrb[0].mxu0
      %v470 = vadd.f32 %v405, %v469
      %v471 = vpop.f32.mrb[0].mxu0
      %472 = vdwg.mxu0
      %s473 = scalar_lea.vmem %s1, 32
      %v474 = vld [vmem:[%s473] sm:$0xf]
      %v475 = vld [vmem:[%s473 + $0x4] sm:$0xf]
      %v476 = vld [vmem:[%s473 + $0x8] sm:$0xf]
      %v477 = vld [vmem:[%s473 + $0xc] sm:$0xf]
      %v482 = vunpack.c.l.b16 %v474
      %v483 = vunpack.c.l.b16 %v475
      %v484 = vunpack.c.l.b16 %v476
      %v485 = vunpack.c.l.b16 %v477
      %v486 = vpack.c.b16 %v483, %v482
      %v487 = vpack.c.b16 %v485, %v484
      %488 = vrot.lane.b32.xlu0 %v322, 126
      %v489 = vpop.permute.xlu0 %488
      %490 = vrot.lane.b32.xlu0 %v327, 126
      %v491 = vpop.permute.xlu0 %490
      %vm492 = vcmask 1031168
      %v493 = vsel %vm492, %v489, %v491
      %v496 = vsel %vm352, %v486, 0
      %v499 = vsel %vm352, %v487, 0
      %501 = vmatprep.subr.bf16.mxu0 0
      %502 = vmatpush1.bf16.msra.mxu0 %v493
      %503 = vmatprep.subr.bf16.mxu0 0
      %504 = vmatpush1.bf16.msra.mxu0 0
      %505 = vmatprep.subr.bf16.mxu0 0
      %506 = vmatpush1.bf16.msra.mxu0 0
      %507 = vmatprep.subr.bf16.mxu0 0
      %508 = vmatpush1.bf16.msra.mxu0 0
      %509 = vmatprep.subr.bf16.mxu0 0
      %510 = vmatpush1.bf16.msra.mxu0 0
      %511 = vmatprep.subr.bf16.mxu0 0
      %512 = vmatpush1.bf16.msra.mxu0 0
      %513 = vmatprep.subr.bf16.mxu0 0
      %514 = vmatpush1.bf16.msra.mxu0 0
      %515 = vmatprep.subr.bf16.mxu0 0
      %516 = vmatpush1.bf16.msra.mxu0 0
      %517 = vmatprep.subr.bf16.mxu0 0
      %518 = vmatpush1.bf16.msra.mxu0 0
      %519 = vmatprep.subr.bf16.mxu0 0
      %520 = vmatpush1.bf16.msra.mxu0 0
      %521 = vmatprep.subr.bf16.mxu0 0
      %522 = vmatpush1.bf16.msra.mxu0 0
      %523 = vmatprep.subr.bf16.mxu0 0
      %524 = vmatpush1.bf16.msra.mxu0 0
      %525 = vmatprep.subr.bf16.mxu0 0
      %526 = vmatpush1.bf16.msra.mxu0 0
      %527 = vmatprep.subr.bf16.mxu0 0
      %528 = vmatpush1.bf16.msra.mxu0 0
      %529 = vmatprep.subr.bf16.mxu0 0
      %530 = vmatpush1.bf16.msra.mxu0 0
      %531 = vmatprep.subr.bf16.mxu0 0
      %532 = vmatpush1.bf16.msra.mxu0 0
      %533 = vmatprep.mubr.bf16.mxu0 0
      %534 = vmatmul.mubr.bf16.gmra.mrb[0].mxu0 %v496
      %v535 = vpop.f32.mrb[0].mxu0
      %v536 = vadd.f32 0.0, %v535
      %v537 = vpop.f32.mrb[0].mxu0
      %v538 = vpop.f32.mrb[0].mxu0
      %v539 = vadd.f32 0.0, %v538
      %v540 = vpop.f32.mrb[0].mxu0
      %541 = vmatprep.mubr.bf16.mxu0 0
      %542 = vmatmul.mubr.bf16.gmra.mrb[0].mxu0 %v499
      %v543 = vpop.f32.mrb[0].mxu0
      %v544 = vadd.f32 0.0, %v543
      %v545 = vpop.f32.mrb[0].mxu0
      %v546 = vpop.f32.mrb[0].mxu0
      %v547 = vadd.f32 0.0, %v546
      %v548 = vpop.f32.mrb[0].mxu0
      %549 = vdwg.mxu0
      %v550 = vadd.f32 %v459, %v536
      %v551 = vadd.f32 %v462, %v539
      %v552 = vadd.f32 %v467, %v544
      %v553 = vadd.f32 %v470, %v547
      %s554 = scalar_lea.vmem %s1, 48
      %v555 = vld [vmem:[%s554] sm:$0xf]
      %v556 = vld [vmem:[%s554 + $0x4] sm:$0xf]
      %v557 = vld [vmem:[%s554 + $0x8] sm:$0xf]
      %v558 = vld [vmem:[%s554 + $0xc] sm:$0xf]
      %v563 = vunpack.c.l.b16 %v555
      %v564 = vunpack.c.l.b16 %v556
      %v565 = vunpack.c.l.b16 %v557
      %v566 = vunpack.c.l.b16 %v558
      %v567 = vpack.c.b16 %v564, %v563
      %v568 = vpack.c.b16 %v566, %v565
      %569 = vrot.lane.b32.xlu0 %v322, 125
      %v570 = vpop.permute.xlu0 %569
      %571 = vrot.lane.b32.xlu0 %v327, 125
      %v572 = vpop.permute.xlu0 %571
      %vm573 = vcmask 1022976
      %v574 = vsel %vm573, %v570, %v572
      %v577 = vsel %vm352, %v567, 0
      %v580 = vsel %vm352, %v568, 0
      %582 = vmatprep.subr.bf16.mxu0 0
      %583 = vmatpush1.bf16.msra.mxu0 %v574
      %584 = vmatprep.subr.bf16.mxu0 0
      %585 = vmatpush1.bf16.msra.mxu0 0
      %586 = vmatprep.subr.bf16.mxu0 0
      %587 = vmatpush1.bf16.msra.mxu0 0
      %588 = vmatprep.subr.bf16.mxu0 0
      %589 = vmatpush1.bf16.msra.mxu0 0
      %590 = vmatprep.subr.bf16.mxu0 0
      %591 = vmatpush1.bf16.msra.mxu0 0
      %592 = vmatprep.subr.bf16.mxu0 0
      %593 = vmatpush1.bf16.msra.mxu0 0
      %594 = vmatprep.subr.bf16.mxu0 0
      %595 = vmatpush1.bf16.msra.mxu0 0
      %596 = vmatprep.subr.bf16.mxu0 0
      %597 = vmatpush1.bf16.msra.mxu0 0
      %598 = vmatprep.subr.bf16.mxu0 0
      %599 = vmatpush1.bf16.msra.mxu0 0
      %600 = vmatprep.subr.bf16.mxu0 0
      %601 = vmatpush1.bf16.msra.mxu0 0
      %602 = vmatprep.subr.bf16.mxu0 0
      %603 = vmatpush1.bf16.msra.mxu0 0
      %604 = vmatprep.subr.bf16.mxu0 0
      %605 = vmatpush1.bf16.msra.mxu0 0
      %606 = vmatprep.subr.bf16.mxu0 0
      %607 = vmatpush1.bf16.msra.mxu0 0
      %608 = vmatprep.subr.bf16.mxu0 0
      %609 = vmatpush1.bf16.msra.mxu0 0
      %610 = vmatprep.subr.bf16.mxu0 0
      %611 = vmatpush1.bf16.msra.mxu0 0
      %612 = vmatprep.subr.bf16.mxu0 0
      %613 = vmatpush1.bf16.msra.mxu0 0
      %614 = vmatprep.mubr.bf16.mxu0 0
      %615 = vmatmul.mubr.bf16.gmra.mrb[0].mxu0 %v577
      %v616 = vpop.f32.mrb[0].mxu0
      %v617 = vadd.f32 0.0, %v616
      %v618 = vpop.f32.mrb[0].mxu0
      %v619 = vpop.f32.mrb[0].mxu0
      %v620 = vadd.f32 0.0, %v619
      %v621 = vpop.f32.mrb[0].mxu0
      %622 = vmatprep.mubr.bf16.mxu0 0
      %623 = vmatmul.mubr.bf16.gmra.mrb[0].mxu0 %v580
      %v624 = vpop.f32.mrb[0].mxu0
      %v625 = vadd.f32 0.0, %v624
      %v626 = vpop.f32.mrb[0].mxu0
      %v627 = vpop.f32.mrb[0].mxu0
      %v628 = vadd.f32 0.0, %v627
      %v629 = vpop.f32.mrb[0].mxu0
      %630 = vdwg.mxu0
      %v631 = vadd.f32 %v550, %v617
      %v632 = vadd.f32 %v551, %v620
      %v633 = vadd.f32 %v552, %v625
      %v634 = vadd.f32 %v553, %v628
      %636 = vset.pattern.permute.xlu0 0
      %637 = vperm.xlu0 %636, %v318
      %v638 = vpop.permute.xlu0 %637
      %641 = vset.pattern.permute.xlu0 0
      %642 = vperm.xlu0 %641, %v319
      %v643 = vpop.permute.xlu0 %642
      %646 = vset.pattern.permute.xlu0 0
      %647 = vperm.xlu0 %646, %v320
      %v648 = vpop.permute.xlu0 %647
      %651 = vset.pattern.permute.xlu0 0
      %652 = vperm.xlu0 %651, %v321
      %v653 = vpop.permute.xlu0 %652
      %v655 = vadd.f32 %v631, %v638
      %v656 = vadd.f32 %v632, %v643
      %v657 = vadd.f32 %v633, %v648
      %v658 = vadd.f32 %v634, %v653
      %v659 = vmax.f32 %v655, 0.0
      %v660 = vmax.f32 %v656, 0.0
      %v661 = vmax.f32 %v657, 0.0
      %v662 = vmax.f32 %v658, 0.0
      %663 = vst [vmem:[%s144] sm:$0xff] %v659
      %664 = vst [vmem:[%s144 + $0x8] sm:$0xff] %v660
      %665 = vst [vmem:[%s144 + $0x10] sm:$0xff] %v661
      %666 = vst [vmem:[%s144 + $0x18] sm:$0xff] %v662
      %p667 = scmp.lt.s32.totalorder %s18, 1
      %s668 = scalar_select %p667, %s18, 1
      %p669 = scmp.lt.s32.totalorder %s19, 0
      %s670 = scalar_select %p669, %s19, 0
      %s671 = smul.addr %s668, 4
      %s672 = sadd.s32 %s670, %s671
      %s673 = smul.addr %s672, 8
      %s674 = scalar_lea.vmem %s3, %s673
      // Predicated region
      $region111: #{encoder_forward.1} parent=27 // pred_check
        %p675 = pneg %p88
      $region112: #{encoder_forward.1} parent=27 // pred_check_branch
        %677 = sbr.rel (%p675) target = $region114
      $region113: #{encoder_forward.1} parent=27 // pred_region
        _
      $region114: #{encoder_forward.1} parent=27 // pred_fallthru
        _
    $region28: #{encoder_forward.1} parent=5 // pred_fallthru
      _
    %p678 = scmp.le.s32.totalorder 2, %s9
    // Predicated region
    $region115: #{encoder_forward.1} parent=5 // pred_check
      %p679 = pneg %p678
    $region116: #{encoder_forward.1} parent=5 // pred_check_branch
      %681 = sbr.rel (%p679) target = $region118
    $region117: #{encoder_forward.1} parent=5 // pred_region
      %s682 = ssub.s32 %s9, 2
      // Predicated region
      $region119: #{encoder_forward.1} parent=117 // pred_check
        %p683 = pneg %p94
      $region120: #{encoder_forward.1} parent=117 // pred_check_branch
        %685 = sbr.rel (%p683) target = $region122
      $region121: #{encoder_forward.1} parent=117 // pred_region
        %p686 = scmp.lt.s32.totalorder %s20, 1
        %s687 = scalar_select %p686, %s20, 1
        %p688 = scmp.lt.s32.totalorder %s21, 0
        %s689 = scalar_select %p688, %s21, 0
        %s690 = smul.addr %s687, 4
        %s691 = sadd.s32 %s689, %s690
        %s692 = smul.addr %s691, 8
        %s693 = scalar_lea.vmem %s3, %s692
      $region122: #{encoder_forward.1} parent=117 // pred_fallthru
        _
    $region118: #{encoder_forward.1} parent=5 // pred_fallthru
      _
  $region6: #{encoder_forward.1} parent=0 // loop_footer
    %s13 = sadd.s32 1, %s9
  $region7: #{encoder_forward.1} parent=0 // loop_footer_branch
    %8 = sbr.rel target = $region3
  $region8: #{encoder_forward.1} parent=0 // loop_exit
    _
  %694 = vsyncmov [#allocation3]
  %s695 = vpop.sfrf %694
  %p696 = scmp.eq.s32.totalorder %s695, 0
  %p697 = pneg %p696
  %699 = shalt.err (%p697)
  %s700 = scalar_lea.sflag [#allocation3], 1
  %701 = vsyncmov %s700
  %s702 = vpop.sfrf %701
  %p703 = scmp.eq.s32.totalorder %s702, 0
  %p704 = pneg %p703
  %706 = shalt.err (%p704)

</llo_original>
